<compile_context>
chip_gen: v5e
topology: v5e:2x2
jax: 0.10.0
libtpu: 0.0.40
codegen_flags: <defaults>
</compile_context>

<pallas_src>
import math

import jax
import jax.numpy as jnp
from jax.experimental import pallas as pl
from jax.experimental.pallas import tpu as pltpu

NEGATIVE_SLOPE = 0.91


def make_fused_forward(weight, bias, H, W, stride=2, negative_slope=NEGATIVE_SLOPE,
                       pack=4, tile_rows=512):
    """Build a fused forward for ConvTranspose2d(Cin, Cout, k, stride=k) + epilogue.

    weight: (Cin, Cout, kH, kW)   (PyTorch ConvTranspose2d layout)
    bias:   (Cout,)
    H, W:   static input spatial dims.
    Assumes stride == kH == kW and padding == 0 (non-overlapping deconv), which
    the target module satisfies.
    """
    Cin, Cout, kH, kW = weight.shape
    assert stride == kH == kW, "fusion assumes non-overlapping deconv (stride == kernel)"
    Hout, Wout = H * kH, W * kW
    K = Cin * H * W                  # per-sample contraction length (= 8 here)
    NCout = Cout * Hout * Wout       # per-sample flattened NCHW output (= 32 here)

    # ---- one-time parameter prep (hoisted out of the per-call / jit path) ----
    # G[(ci,i,j), (co,ho,wo)] = weight[ci,co,ki,kj]*[ho==stride*i+ki]*[wo==stride*j+kj]
    eye_h = jnp.eye(H, dtype=jnp.float32)
    eye_w = jnp.eye(W, dtype=jnp.float32)
    g_mat = jnp.einsum(
        "cokl,ia,jb->cijoakbl", weight.astype(jnp.float32), eye_h, eye_w
    ).reshape(K, NCout)
    b_row = jnp.repeat(bias.astype(jnp.float32), Hout * Wout).reshape(1, NCout)

    # Lane-dense packing: P samples per row via a block-diagonal G.
    P = int(pack)
    Kp, Np = P * K, P * NCout                                   # 32, 128 here
    g_bd = jnp.kron(jnp.eye(P, dtype=jnp.float32), g_mat)       # (P*K, P*NCout)
    b_bd = jnp.tile(b_row, (1, P))                               # (1, P*NCout)

    # Epilogue constants: out = t1 + where(t1+ns > 0, t1+ns, (t1+ns)*ns)
    #                         = where(t1 > -ns, 2*t1 + ns, (1+ns)*t1 + ns*ns)
    ns = float(negative_slope)
    c_neg_a = 1.0 + ns
    c_neg_b = ns * ns

    # ---- fused kernel: one MXU matmul + folded elementwise epilogue ----------
    def kernel(x_ref, g_ref, b_ref, o_ref):
        t1 = jnp.dot(x_ref[...], g_ref[...],
                     preferred_element_type=jnp.float32) + b_ref[...]
        o_ref[...] = jnp.where(t1 > -ns, 2.0 * t1 + ns, c_neg_a * t1 + c_neg_b)

    @jax.jit
    def forward(x_nchw):
        N = x_nchw.shape[0]
        rows = (N + P - 1) // P                       # packed rows needed
        tr = tile_rows if rows >= tile_rows else rows  # tile_rows is a multiple of 8
        rows_pad = ((rows + tr - 1) // tr) * tr
        n_pad = rows_pad * P

        x2d = x_nchw.reshape(N, K)                    # free: NCHW is (n, ci, i, j)-major
        if n_pad != N:
            x2d = jnp.pad(x2d, ((0, n_pad - N), (0, 0)))
        x_packed = x2d.reshape(rows_pad, Kp)          # free row-major regrouping

        o_packed = pl.pallas_call(
            kernel,
            out_shape=jax.ShapeDtypeStruct((rows_pad, Np), jnp.float32),
            grid=(rows_pad // tr,),
            in_specs=[
                pl.BlockSpec((tr, Kp), lambda i: (i, 0)),    # x tile
                pl.BlockSpec((Kp, Np), lambda i: (0, 0)),    # G resident
                pl.BlockSpec((1, Np), lambda i: (0, 0)),     # bias resident
            ],
            out_specs=pl.BlockSpec((tr, Np), lambda i: (i, 0)),
            compiler_params=pltpu.CompilerParams(
                dimension_semantics=("parallel",)),
        )(x_packed, g_bd, b_bd)

        o2d = o_packed.reshape(n_pad, NCout)          # free: rows are NCHW-flat already
        if n_pad != N:
            o2d = o2d[:N]
        return o2d.reshape(N, Cout, Hout, Wout)

    return forward


def _reference_forward(x_nchw, weight, bias, negative_slope=NEGATIVE_SLOPE):
    """Pure-JAX reference (same math as the PyTorch module)."""
    t1_blocks = jnp.einsum("ncij,cokl->noikjl", x_nchw, weight)
    N, Cout, H, kH, W, kW = t1_blocks.shape
    t1 = t1_blocks.reshape(N, Cout, H * kH, W * kW) + bias[None, :, None, None]
    t2 = t1 + negative_slope
    t5 = jnp.where(t2 > 0, t2, t2 * negative_slope)
    return t1 + t5


if __name__ == "__main__":
    key = jax.random.PRNGKey(0)
    kx, kw, kb = jax.random.split(key, 3)

    # Shapes implied by the module: x (16, 2, 2, 2), ConvTranspose2d(2, 2, 2, stride=2)
    N, Cin, H, W = 16, 2, 2, 2
    Cout, kH, kW = 2, 2, 2

    x = jax.random.normal(kx, (N, Cin, H, W), dtype=jnp.float32)
    fan = Cin * kH * kW
    bound = 1.0 / math.sqrt(fan)
    weight = jax.random.uniform(kw, (Cin, Cout, kH, kW), jnp.float32, -bound, bound)
    bias = jax.random.uniform(kb, (Cout,), jnp.float32, -bound, bound)

    forward = make_fused_forward(weight, bias, H, W, stride=2,
                                 negative_slope=NEGATIVE_SLOPE)

    out = jax.block_until_ready(forward(x))
    ref = _reference_forward(x, weight, bias, NEGATIVE_SLOPE)
    assert out.shape == (N, Cout, H * kH, W * kW)
    assert jnp.allclose(out, ref, atol=1e-5, rtol=1e-5)

    # Exercise the batch-padding path (N not a multiple of the packing factor).
    x2 = jax.random.normal(jax.random.PRNGKey(1), (50, Cin, H, W), dtype=jnp.float32)
    out2 = jax.block_until_ready(forward(x2))
    ref2 = _reference_forward(x2, weight, bias, NEGATIVE_SLOPE)
    assert jnp.allclose(out2, ref2, atol=1e-5, rtol=1e-5)

    print("KERNEL_OK")
</pallas_src>

<mosaic_0001>
module attributes {stable_mosaic.version = 11 : i64} {
  func.func @kernel(%arg0: i32, %arg1: memref<4x32xf32, #tpu.memory_space<vmem>>, %arg2: memref<32x128xf32, #tpu.memory_space<vmem>>, %arg3: memref<1x128xf32, #tpu.memory_space<vmem>>, %arg4: memref<4x128xf32, #tpu.memory_space<vmem>>) attributes {dimension_semantics = [#tpu.dimension_semantics<parallel>], iteration_bounds = array<i64: 1>, scalar_prefetch = 0 : i64, scratch_operands = 0 : i64, tpu.core_type = #tpu.core_type<tc>, window_params = [{transform_indices = @transform_0, window_bounds = array<i64: 4, 32>}, {pipeline_mode = #tpu.pipeline_mode<synchronous>, transform_indices = @transform_1, window_bounds = array<i64: 32, 128>}, {pipeline_mode = #tpu.pipeline_mode<synchronous>, transform_indices = @transform_2, window_bounds = array<i64: 1, 128>}, {transform_indices = @transform_3, window_bounds = array<i64: 4, 128>}]} {
    %c0 = arith.constant 0 : index
    %c0_0 = arith.constant 0 : index
    %0 = vector.load %arg1[%c0, %c0_0] : memref<4x32xf32, #tpu.memory_space<vmem>>, vector<4x32xf32>
    %c0_1 = arith.constant 0 : index
    %c0_2 = arith.constant 0 : index
    %1 = vector.load %arg2[%c0_1, %c0_2] : memref<32x128xf32, #tpu.memory_space<vmem>>, vector<32x128xf32>
    %cst = arith.constant dense<0.000000e+00> : vector<4x128xf32>
    %2 = tpu.matmul %0, %1, %cst {dimension_numbers = #tpu.dot_dimension_numbers<[1], [0], [0], [1], [0, 0, 1, 1], [], []>} : vector<4x32xf32>, vector<32x128xf32>, vector<4x128xf32> -> vector<4x128xf32>
    %c0_3 = arith.constant 0 : index
    %c0_4 = arith.constant 0 : index
    %3 = vector.load %arg3[%c0_3, %c0_4] : memref<1x128xf32, #tpu.memory_space<vmem>>, vector<1x128xf32>
    %4 = vector.broadcast %3 : vector<1x128xf32> to vector<4x128xf32>
    %5 = arith.addf %2, %4 : vector<4x128xf32>
    %cst_5 = arith.constant -9.100000e-01 : f32
    %6 = vector.broadcast %cst_5 : f32 to vector<4x128xf32>
    %7 = arith.cmpf ogt, %5, %6 : vector<4x128xf32>
    %cst_6 = arith.constant 2.000000e+00 : f32
    %8 = vector.broadcast %cst_6 : f32 to vector<4x128xf32>
    %9 = arith.mulf %8, %5 : vector<4x128xf32>
    %cst_7 = arith.constant 9.100000e-01 : f32
    %10 = vector.broadcast %cst_7 : f32 to vector<4x128xf32>
    %11 = arith.addf %9, %10 : vector<4x128xf32>
    %cst_8 = arith.constant 1.910000e+00 : f32
    %12 = vector.broadcast %cst_8 : f32 to vector<4x128xf32>
    %13 = arith.mulf %12, %5 : vector<4x128xf32>
    %cst_9 = arith.constant 8.281000e-01 : f32
    %14 = vector.broadcast %cst_9 : f32 to vector<4x128xf32>
    %15 = arith.addf %13, %14 : vector<4x128xf32>
    %16 = arith.select %7, %11, %15 : vector<4x128xi1>, vector<4x128xf32>
    %c0_10 = arith.constant 0 : index
    %c0_11 = arith.constant 0 : index
    %17 = vector.load %arg4[%c0_10, %c0_11] : memref<4x128xf32, #tpu.memory_space<vmem>>, vector<4x128xf32>
    tpu.vector_store %arg4[%c0_10, %c0_11], %16 {strides = array<i32>} : memref<4x128xf32, #tpu.memory_space<vmem>>, vector<4x128xf32>,
    return
  }
  func.func @transform_0(%arg0: i32) -> (i32, i32) {
    %c0_i32 = arith.constant 0 : i32
    %c0_i32_0 = arith.constant 0 : i32
    return %arg0, %c0_i32 : i32, i32
  }
  func.func @transform_1(%arg0: i32) -> (i32, i32) {
    %c0_i32 = arith.constant 0 : i32
    %c0_i32_0 = arith.constant 0 : i32
    %c0_i32_1 = arith.constant 0 : i32
    return %c0_i32, %c0_i32_0 : i32, i32
  }
  func.func @transform_2(%arg0: i32) -> (i32, i32) {
    %c0_i32 = arith.constant 0 : i32
    %c0_i32_0 = arith.constant 0 : i32
    %c0_i32_1 = arith.constant 0 : i32
    return %c0_i32, %c0_i32_0 : i32, i32
  }
  func.func @transform_3(%arg0: i32) -> (i32, i32) {
    %c0_i32 = arith.constant 0 : i32
    %c0_i32_0 = arith.constant 0 : i32
    return %arg0, %c0_i32 : i32, i32
  }
}

</mosaic_0001>

<llo_original>
// kernel: forward.1
$region0: #{forward.1}
  #allocation0 [shape = 'u32[]', space=smem, size = 0x4, offset = 0x4, fixed_abs, tag = 'smem constant byte address 0x4 - core index']
  #allocation1 [shape = 'u32[72,128]{1,0:T(1,128)}', space=vmem, size = 0x9000, scoped, tag = 'internal scratch']
  %s0 = inlined_call_operand.vmem [shape: f32[4,32], index: 0, kind: input, shape index: {}]
  %s1 = inlined_call_operand.vmem [shape: f32[32,128], index: 1, kind: input, shape index: {}]
  %s2 = inlined_call_operand.vmem [shape: f32[1,128], index: 2, kind: input, shape index: {}]
  %s3 = inlined_call_operand.vmem [shape: f32[4,128], index: 3, kind: output, shape index: {}]
  %s4 = sld [smem:[#allocation0]]
  $region22: #{forward.1} parent=0
    _
  %s6 = ssub.s32 1, %s4
  %s7 = scalar_select 0, %s6, %s4
  // Predicated region
  $region2: #{forward.1} parent=0 // pred_check
    _
  $region3: #{forward.1} parent=0 // pred_check_branch
    %9 = sbr.rel (0) target = $region5
  $region4: #{forward.1} parent=0 // pred_region
    _
  $region5: #{forward.1} parent=0 // pred_fallthru
    _
  // Predicated region
  $region6: #{forward.1} parent=0 // pred_check
    _
  $region7: #{forward.1} parent=0 // pred_check_branch
    %11 = sbr.rel (0) target = $region9
  $region8: #{forward.1} parent=0 // pred_region
    _
  $region9: #{forward.1} parent=0 // pred_fallthru
    _
  // Predicated region
  $region10: #{forward.1} parent=0 // pred_check
    _
  $region11: #{forward.1} parent=0 // pred_check_branch
    %13 = sbr.rel (0) target = $region13
  $region12: #{forward.1} parent=0 // pred_region
    _
  $region13: #{forward.1} parent=0 // pred_fallthru
    _
  %v14 = vld [vmem:[%s0] sm:$0xf]
  %v15 = vld [vmem:[%s1] sm:$0xff]
  %v16 = vld [vmem:[%s1 + $0x8] sm:$0xff]
  %v17 = vld [vmem:[%s1 + $0x10] sm:$0xff]
  %v18 = vld [vmem:[%s1 + $0x18] sm:$0xff]
  %v19 = vld [vmem:[%s2] sm:$0x1]
  %v21 = vperm.slane %v19, 0
  %vm23 = vcmask 261120
  %v25 = vsel %vm23, %v14, 0
  %27 = vmatpush.msra.mxu0 0.0
  %28 = vmatpush.msra.mxu0 0.0
  %29 = vmatpush.msra.mxu0 0.0
  %30 = vmatpush.msra.mxu0 0.0
  %31 = vmatpush.msra.mxu0 0.0
  %32 = vmatpush.msra.mxu0 0.0
  %33 = vmatpush.msra.mxu0 0.0
  %34 = vmatpush.msra.mxu0 0.0
  %35 = vmatpush.msra.mxu0 0.0
  %36 = vmatpush.msra.mxu0 0.0
  %37 = vmatpush.msra.mxu0 0.0
  %38 = vmatpush.msra.mxu0 0.0
  %39 = vmatpush.msra.mxu0 %v18
  %40 = vmatpush.msra.mxu0 %v17
  %41 = vmatpush.msra.mxu0 %v16
  %42 = vmatpush.msra.mxu0 %v15
  %43 = vmatmul.f32.gmra.mxu0 %v25
  %v44 = vpop.f32.mrf.mxu0
  %v45 = vadd.f32 %v21, %v44
  %46 = vdwg.mxu0
  %vm47 = vcmp.gt.f32.partialorder %v45, -0.91
  %v48 = vmul.f32 %v45, 2.0
  %v49 = vadd.f32 %v48, 0.91
  %v50 = vmul.f32 %v45, 1.91
  %v51 = vadd.f32 %v50, 0.8281
  %v52 = vsel %vm47, %v49, %v51
  %53 = vst [vmem:[%s3] sm:$0xf] %v52
  // Predicated region
  $region14: #{forward.1} parent=0 // pred_check
    _
  $region15: #{forward.1} parent=0 // pred_check_branch
    %55 = sbr.rel (0) target = $region17
  $region16: #{forward.1} parent=0 // pred_region
    _
  $region17: #{forward.1} parent=0 // pred_fallthru
    _
  // Predicated region
  $region18: #{forward.1} parent=0 // pred_check
    _
  $region19: #{forward.1} parent=0 // pred_check_branch
    %57 = sbr.rel (0) target = $region21
  $region20: #{forward.1} parent=0 // pred_region
    _
  $region21: #{forward.1} parent=0 // pred_fallthru
    _

</llo_original>
